<compile_context>
chip_gen: v6e
topology: v6e:2x2x1
jax: 0.10.0
libtpu: 0.0.40
codegen_flags: <defaults>
</compile_context>

<pallas_src>
import functools
import math

import jax
import jax.numpy as jnp
from jax import lax
from jax.experimental import pallas as pl
from jax.experimental.pallas import tpu as pltpu


def _round_up(x, m):
    return ((x + m - 1) // m) * m


def seq2sanger_kernel(x4_ref, wg_ref, whh_ref, wfc_ref, bfc_ref, out_ref,
                      xg_ref, hs_ref, h_ref, c_ref, *, Tc, Bb, H):
    # Persistent recurrent state: reset at the start of each batch block's
    # sweep over the (sequential, "arbitrary") time-chunk grid axis.
    @pl.when(pl.program_id(1) == 0)
    def _():
        h_ref[...] = jnp.zeros_like(h_ref)
        c_ref[...] = jnp.zeros_like(c_ref)

    # Fused Conv1d + LSTM input projection + gate biases (ones column in x4):
    # one bf16 MXU matmul for the whole time chunk.
    x4 = x4_ref[0, 0]                                           # (Tc*Bb, 3C+1) bf16
    xg_ref[...] = jnp.dot(x4, wg_ref[...],
                          preferred_element_type=jnp.float32)   # (Tc*Bb, 4H) f32

    def step(t, carry):
        row = pl.multiple_of(t * Bb, Bb)                        # Bb is a multiple of 8
        gates = xg_ref[pl.ds(row, Bb), :] + jnp.dot(
            h_ref[...], whh_ref[...],
            preferred_element_type=jnp.float32)                 # (Bb, 4H) f32
        i = jax.nn.sigmoid(gates[:, 0 * H:1 * H])
        f = jax.nn.sigmoid(gates[:, 1 * H:2 * H])
        g = jnp.tanh(gates[:, 2 * H:3 * H])
        o = jax.nn.sigmoid(gates[:, 3 * H:4 * H])
        c = f * c_ref[...] + i * g
        h = o * jnp.tanh(c)
        c_ref[...] = c
        hb = h.astype(jnp.bfloat16)
        h_ref[...] = hb
        hs_ref[pl.ds(row, Bb), :] = hb
        return carry

    unroll = True if Tc <= 16 else (2 if Bb * H >= 16384 else 4)
    lax.fori_loop(0, Tc, step, 0, unroll=unroll)

    # Linear padded to 8 output lanes + numerically stable, exactly-normalized
    # softmax.  Padded columns carry a -1e30 bias -> exactly zero probability.
    logits = (jnp.dot(hs_ref[...], wfc_ref[...],
                      preferred_element_type=jnp.float32)
              + bfc_ref[...])                                   # (Tc*Bb, 8) f32
    m = jnp.max(logits, axis=-1, keepdims=True)
    e = jnp.exp(logits - m)
    s = jnp.sum(e, axis=-1, keepdims=True)
    out_ref[0, 0] = (e / s).astype(out_ref.dtype)


def sequence_to_sanger(x_ncw, params, *, batch_block=128, time_block=256):
    """x_ncw: (B, input_size, seq_len) f32, NCW like the PyTorch module.
    Returns (B, seq_len, 4) softmax probabilities."""
    B, C, T = x_ncw.shape
    H = params["w_hh_t"].shape[0]
    NOUT = params["w_fc_pad"].shape[-1]          # 8
    D4 = params["w_gate"].shape[0]               # 3C + 1
    assert D4 == 3 * C + 1

    # Batch block: multiple of 8 (sublane-aligned per-step slices), capped.
    Bb = max(8, _round_up(min(_round_up(B, 8), max(batch_block, 8)), 8))
    nb = pl.cdiv(B, Bb)
    Bp = nb * Bb

    # Time chunk from a conservative VMEM budget (fits v5e's 16 MiB default
    # scoped limit; ~bytes per (t, b) row of xg + hs + double-buffered x4/out).
    per_row = 16 * H + 2 * H + 2 * 256 + 2 * 512
    budget = 12 * 1024 * 1024
    max_rows = max(Bb, budget // per_row)
    Tc = max(1, min(T, time_block, max_rows // Bb))
    nt = pl.cdiv(T, Tc)
    Tp = nt * Tc

    # (B, C, T) -> (Tp, Bp, C): time-major, zero batch/time tail, zero conv halo.
    x_tbc = jnp.transpose(x_ncw, (2, 0, 1))
    x_tbc = jnp.pad(x_tbc, ((0, Tp - T), (0, Bp - B), (0, 0)))
    xh = jnp.pad(x_tbc, ((1, 1), (0, 0), (0, 0)))
    # Shifted concat of the three conv taps + a ones column (bias fold).
    x3 = jnp.concatenate([xh[0:Tp], xh[1:Tp + 1], xh[2:Tp + 2]], axis=-1)
    x4 = jnp.concatenate([x3, jnp.ones((Tp, Bp, 1), x3.dtype)], axis=-1)
    # (Tp, Bp, D4) -> (nb, nt, Tc*Bb, D4), time-major inside a chunk, bf16.
    x4 = (x4.reshape(nt, Tc, nb, Bb, D4).transpose(2, 0, 1, 3, 4)
            .reshape(nb, nt, Tc * Bb, D4).astype(jnp.bfloat16))

    kernel = functools.partial(seq2sanger_kernel, Tc=Tc, Bb=Bb, H=H)
    grid_spec = pltpu.PrefetchScalarGridSpec(
        num_scalar_prefetch=0,
        grid=(nb, nt),
        in_specs=[
            pl.BlockSpec((1, 1, Tc * Bb, D4), lambda n, t: (n, t, 0, 0)),  # conv taps + ones
            pl.BlockSpec((D4, 4 * H), lambda n, t: (0, 0)),                # fused conv+W_ih+bias
            pl.BlockSpec((H, 4 * H), lambda n, t: (0, 0)),                 # W_hh^T (bf16)
            pl.BlockSpec((H, NOUT), lambda n, t: (0, 0)),                  # W_fc^T padded to 8
            pl.BlockSpec((1, NOUT), lambda n, t: (0, 0)),                  # b_fc padded (-1e30)
        ],
        out_specs=pl.BlockSpec((1, 1, Tc * Bb, NOUT), lambda n, t: (n, t, 0, 0)),
        scratch_shapes=[
            pltpu.VMEM((Tc * Bb, 4 * H), jnp.float32),   # gate pre-activations (chunk)
            pltpu.VMEM((Tc * Bb, H), jnp.bfloat16),      # hidden states (chunk)
            pltpu.VMEM((Bb, H), jnp.bfloat16),           # h_t (persists across chunks)
            pltpu.VMEM((Bb, H), jnp.float32),            # c_t (persists across chunks)
        ],
    )
    out_pad = pl.pallas_call(
        kernel,
        out_shape=jax.ShapeDtypeStruct((nb, nt, Tc * Bb, NOUT), jnp.float32),
        grid_spec=grid_spec,
        compiler_params=pltpu.CompilerParams(
            dimension_semantics=("parallel", "arbitrary")),
    )(x4, params["w_gate"], params["w_hh_t"], params["w_fc_pad"],
      params["b_fc_pad"])

    # Slice the 4 real classes BEFORE the transpose (avoids copying padding).
    out = out_pad[..., :4].reshape(nb, nt, Tc, Bb, 4)
    out = out.transpose(0, 3, 1, 2, 4).reshape(Bp, Tp, 4)
    return out[:B, :T]


def init_torch_params(key, input_size, hidden_size):
    """PyTorch-layout parameters with PyTorch-style uniform init."""
    ks = jax.random.split(key, 8)

    def u(k, shape, s):
        return jax.random.uniform(k, shape, jnp.float32, -s, s)

    k_conv = 1.0 / math.sqrt(input_size * 3)
    k_lstm = 1.0 / math.sqrt(hidden_size)
    k_fc = 1.0 / math.sqrt(hidden_size)
    return {
        "w_conv": u(ks[0], (hidden_size, input_size, 3), k_conv),   # (H, C, K)
        "b_conv": u(ks[1], (hidden_size,), k_conv),
        "w_ih": u(ks[2], (4 * hidden_size, hidden_size), k_lstm),   # (4H, H)
        "w_hh": u(ks[3], (4 * hidden_size, hidden_size), k_lstm),
        "b_ih": u(ks[4], (4 * hidden_size,), k_lstm),
        "b_hh": u(ks[5], (4 * hidden_size,), k_lstm),
        "w_fc": u(ks[6], (4, hidden_size), k_fc),                   # (out, in)
        "b_fc": u(ks[7], (4,), k_fc),
    }


def prepare_kernel_params(raw, n_out_pad=8):
    """Fuse conv + biases into the LSTM input projection; pad the final linear."""
    H = raw["b_conv"].shape[0]
    w_ih_t = raw["w_ih"].T                                    # (H, 4H)
    w_taps = jnp.transpose(raw["w_conv"], (2, 1, 0))          # (K, C, H)
    w_gate = jnp.concatenate([w_taps[k] @ w_ih_t for k in range(3)], axis=0)  # (3C, 4H)
    b_gate = raw["b_conv"] @ w_ih_t + raw["b_ih"] + raw["b_hh"]               # (4H,)
    w_gate = jnp.concatenate([w_gate, b_gate.reshape(1, 4 * H)], axis=0)      # (3C+1, 4H)
    w_fc_pad = jnp.pad(raw["w_fc"].T, ((0, 0), (0, n_out_pad - 4)))           # (H, 8)
    b_fc_pad = jnp.concatenate(
        [raw["b_fc"], jnp.full((n_out_pad - 4,), -1e30, jnp.float32)]
    ).reshape(1, n_out_pad)
    return {
        "w_gate": w_gate.astype(jnp.bfloat16),
        "w_hh_t": raw["w_hh"].T.astype(jnp.bfloat16),
        "w_fc_pad": w_fc_pad.astype(jnp.bfloat16),
        "b_fc_pad": b_fc_pad.astype(jnp.float32),
    }


def reference_forward(x_ncw, raw):
    """Pure-JAX f32 reference matching the PyTorch module forward."""
    B, C, T = x_ncw.shape
    H = raw["b_conv"].shape[0]
    x = jnp.transpose(x_ncw, (0, 2, 1))                       # (B, T, C)
    xp = jnp.pad(x, ((0, 0), (1, 1), (0, 0)))
    W = jnp.transpose(raw["w_conv"], (2, 1, 0))               # (K, C, H)
    conv = (xp[:, 0:T] @ W[0] + xp[:, 1:T + 1] @ W[1]
            + xp[:, 2:T + 2] @ W[2] + raw["b_conv"])           # (B, T, H)
    w_ih_t, w_hh_t = raw["w_ih"].T, raw["w_hh"].T
    bg = raw["b_ih"] + raw["b_hh"]

    def cell(carry, xt):
        h, c = carry
        g = xt @ w_ih_t + h @ w_hh_t + bg
        i = jax.nn.sigmoid(g[:, 0 * H:1 * H])
        f = jax.nn.sigmoid(g[:, 1 * H:2 * H])
        gg = jnp.tanh(g[:, 2 * H:3 * H])
        o = jax.nn.sigmoid(g[:, 3 * H:4 * H])
        c = f * c + i * gg
        h = o * jnp.tanh(c)
        return (h, c), h

    init = (jnp.zeros((B, H), jnp.float32), jnp.zeros((B, H), jnp.float32))
    _, hs = lax.scan(cell, init, jnp.transpose(conv, (1, 0, 2)))
    hs = jnp.transpose(hs, (1, 0, 2))                         # (B, T, H)
    logits = hs @ raw["w_fc"].T + raw["b_fc"]
    return jax.nn.softmax(logits, axis=-1)


def _check(x, raw, params, **kw):
    out = jax.block_until_ready(sequence_to_sanger(x, params, **kw))
    B, _, T = x.shape
    assert out.shape == (B, T, 4)
    # Exact softmax normalization now (no approximate reciprocal).
    assert bool(jnp.allclose(jnp.sum(out, axis=-1), 1.0, atol=1e-4))
    ref = reference_forward(x, raw)
    assert bool(jnp.allclose(out, ref, atol=3e-2))  # bf16 weights -> loose tol
    return out


if __name__ == "__main__":
    key = jax.random.PRNGKey(0)
    k_x, k_p, k_x2 = jax.random.split(key, 3)

    # Primary small config: batch=2, channels=4, seq=8, hidden=32.
    B, C, T, H = 2, 4, 8, 32
    x = jax.random.normal(k_x, (B, C, T), dtype=jnp.float32)   # NCW like Conv1d
    raw = init_torch_params(k_p, C, H)
    params = prepare_kernel_params(raw)
    # time_block=4 -> two time chunks: exercises persistent h/c across chunks.
    _check(x, raw, params, time_block=4)

    # Second config: multiple batch blocks + batch/time padding paths.
    x2 = jax.random.normal(k_x2, (20, C, 12), dtype=jnp.float32)
    _check(x2, raw, params, batch_block=16, time_block=5)

    print("KERNEL_OK")
</pallas_src>

<mosaic_0001>
module attributes {stable_mosaic.version = 11 : i64} {
  func.func @seq2sanger_kernel(%arg0: i32, %arg1: i32, %arg2: memref<1x1x32x13xbf16, #tpu.memory_space<vmem>>, %arg3: memref<13x128xbf16, #tpu.memory_space<vmem>>, %arg4: memref<32x128xbf16, #tpu.memory_space<vmem>>, %arg5: memref<32x8xbf16, #tpu.memory_space<vmem>>, %arg6: memref<1x8xf32, #tpu.memory_space<vmem>>, %arg7: memref<1x1x32x8xf32, #tpu.memory_space<vmem>>, %arg8: memref<32x128xf32, #tpu.memory_space<vmem>>, %arg9: memref<32x32xbf16, #tpu.memory_space<vmem>>, %arg10: memref<8x32xbf16, #tpu.memory_space<vmem>>, %arg11: memref<8x32xf32, #tpu.memory_space<vmem>>) attributes {dimension_semantics = [#tpu.dimension_semantics<parallel>, #tpu.dimension_semantics<arbitrary>], iteration_bounds = array<i64: 1, 2>, scalar_prefetch = 0 : i64, scratch_operands = 4 : i64, tpu.core_type = #tpu.core_type<tc>, window_params = [{transform_indices = @transform_0, window_bounds = array<i64: 1, 1, 32, 13>}, {pipeline_mode = #tpu.pipeline_mode<synchronous>, transform_indices = @transform_1, window_bounds = array<i64: 13, 128>}, {pipeline_mode = #tpu.pipeline_mode<synchronous>, transform_indices = @transform_2, window_bounds = array<i64: 32, 128>}, {pipeline_mode = #tpu.pipeline_mode<synchronous>, transform_indices = @transform_3, window_bounds = array<i64: 32, 8>}, {pipeline_mode = #tpu.pipeline_mode<synchronous>, transform_indices = @transform_4, window_bounds = array<i64: 1, 8>}, {transform_indices = @transform_5, window_bounds = array<i64: 1, 1, 32, 8>}]} {
    %c0_i32 = arith.constant 0 : i32
    %0 = arith.cmpi eq, %arg1, %c0_i32 : i32
    %1 = arith.extui %0 : i1 to i32
    %c0_i32_0 = arith.constant 0 : i32
    %2 = arith.cmpi ne, %1, %c0_i32_0 : i32
    scf.if %2 {
      %cst_89 = arith.constant 0.000000e+00 : bf16
      %182 = vector.broadcast %cst_89 : bf16 to vector<8x32xbf16>
      %c0_90 = arith.constant 0 : index
      %c0_91 = arith.constant 0 : index
      %183 = vector.load %arg10[%c0_90, %c0_91] : memref<8x32xbf16, #tpu.memory_space<vmem>>, vector<8x32xbf16>
      tpu.vector_store %arg10[%c0_90, %c0_91], %182 {strides = array<i32>} : memref<8x32xbf16, #tpu.memory_space<vmem>>, vector<8x32xbf16>,
      %cst_92 = arith.constant 0.000000e+00 : f32
      %184 = vector.broadcast %cst_92 : f32 to vector<8x32xf32>
      %c0_93 = arith.constant 0 : index
      %c0_94 = arith.constant 0 : index
      %185 = vector.load %arg11[%c0_93, %c0_94] : memref<8x32xf32, #tpu.memory_space<vmem>>, vector<8x32xf32>
      tpu.vector_store %arg11[%c0_93, %c0_94], %184 {strides = array<i32>} : memref<8x32xf32, #tpu.memory_space<vmem>>, vector<8x32xf32>,
    } else {
    }
    %c0 = arith.constant 0 : index
    %c0_1 = arith.constant 0 : index
    %c0_2 = arith.constant 0 : index
    %c0_3 = arith.constant 0 : index
    %3 = vector.load %arg2[%c0, %c0_1, %c0_2, %c0_3] : memref<1x1x32x13xbf16, #tpu.memory_space<vmem>>, vector<1x1x32x13xbf16>
    %4 = vector.shape_cast %3 : vector<1x1x32x13xbf16> to vector<32x13xbf16>
    %c0_4 = arith.constant 0 : index
    %c0_5 = arith.constant 0 : index
    %5 = vector.load %arg3[%c0_4, %c0_5] : memref<13x128xbf16, #tpu.memory_space<vmem>>, vector<13x128xbf16>
    %cst = arith.constant dense<0.000000e+00> : vector<32x128xf32>
    %6 = tpu.matmul %4, %5, %cst {dimension_numbers = #tpu.dot_dimension_numbers<[1], [0], [0], [1], [0, 0, 1, 1], [], []>} : vector<32x13xbf16>, vector<13x128xbf16>, vector<32x128xf32> -> vector<32x128xf32>
    %c0_6 = arith.constant 0 : index
    %c0_7 = arith.constant 0 : index
    %7 = vector.load %arg8[%c0_6, %c0_7] : memref<32x128xf32, #tpu.memory_space<vmem>>, vector<32x128xf32>
    tpu.vector_store %arg8[%c0_6, %c0_7], %6 {strides = array<i32>} : memref<32x128xf32, #tpu.memory_space<vmem>>, vector<32x128xf32>,
    %c0_i32_8 = arith.constant 0 : i32
    %c8_i32 = arith.constant 8 : i32
    %8 = arith.muli %c0_i32_8, %c8_i32 : i32
    %9 = tpu.assume_multiple %8, 8 : i32
    %10 = arith.index_cast %9 : i32 to index
    %c0_9 = arith.constant 0 : index
    %11 = vector.load %arg8[%10, %c0_9] : memref<32x128xf32, #tpu.memory_space<vmem>>, vector<8x128xf32>
    %c0_10 = arith.constant 0 : index
    %c0_11 = arith.constant 0 : index
    %12 = vector.load %arg10[%c0_10, %c0_11] : memref<8x32xbf16, #tpu.memory_space<vmem>>, vector<8x32xbf16>
    %c0_12 = arith.constant 0 : index
    %c0_13 = arith.constant 0 : index
    %13 = vector.load %arg4[%c0_12, %c0_13] : memref<32x128xbf16, #tpu.memory_space<vmem>>, vector<32x128xbf16>
    %cst_14 = arith.constant dense<0.000000e+00> : vector<8x128xf32>
    %14 = tpu.matmul %12, %13, %cst_14 {dimension_numbers = #tpu.dot_dimension_numbers<[1], [0], [0], [1], [0, 0, 1, 1], [], []>} : vector<8x32xbf16>, vector<32x128xbf16>, vector<8x128xf32> -> vector<8x128xf32>
    %15 = arith.addf %11, %14 : vector<8x128xf32>
    %16 = vector.extract_strided_slice %15 {offsets = [0, 0], sizes = [8, 32], strides = [1, 1]} : vector<8x128xf32> to vector<8x32xf32>
    %17 = arith.negf %16 : vector<8x32xf32>
    %18 = math.exp %17 : vector<8x32xf32>
    %cst_15 = arith.constant 1.000000e+00 : f32
    %19 = vector.broadcast %cst_15 : f32 to vector<8x32xf32>
    %20 = arith.addf %19, %18 : vector<8x32xf32>
    %21 = arith.divf %19, %20 : vector<8x32xf32>
    %22 = vector.extract_strided_slice %15 {offsets = [0, 32], sizes = [8, 32], strides = [1, 1]} : vector<8x128xf32> to vector<8x32xf32>
    %23 = arith.negf %22 : vector<8x32xf32>
    %24 = math.exp %23 : vector<8x32xf32>
    %cst_16 = arith.constant 1.000000e+00 : f32
    %25 = vector.broadcast %cst_16 : f32 to vector<8x32xf32>
    %26 = arith.addf %25, %24 : vector<8x32xf32>
    %27 = arith.divf %25, %26 : vector<8x32xf32>
    %28 = vector.extract_strided_slice %15 {offsets = [0, 64], sizes = [8, 32], strides = [1, 1]} : vector<8x128xf32> to vector<8x32xf32>
    %29 = math.tanh %28 : vector<8x32xf32>
    %30 = vector.extract_strided_slice %15 {offsets = [0, 96], sizes = [8, 32], strides = [1, 1]} : vector<8x128xf32> to vector<8x32xf32>
    %31 = arith.negf %30 : vector<8x32xf32>
    %32 = math.exp %31 : vector<8x32xf32>
    %cst_17 = arith.constant 1.000000e+00 : f32
    %33 = vector.broadcast %cst_17 : f32 to vector<8x32xf32>
    %34 = arith.addf %33, %32 : vector<8x32xf32>
    %35 = arith.divf %33, %34 : vector<8x32xf32>
    %c0_18 = arith.constant 0 : index
    %c0_19 = arith.constant 0 : index
    %36 = vector.load %arg11[%c0_18, %c0_19] : memref<8x32xf32, #tpu.memory_space<vmem>>, vector<8x32xf32>
    %37 = arith.mulf %27, %36 : vector<8x32xf32>
    %38 = arith.mulf %21, %29 : vector<8x32xf32>
    %39 = arith.addf %37, %38 : vector<8x32xf32>
    %40 = math.tanh %39 : vector<8x32xf32>
    %41 = arith.mulf %35, %40 : vector<8x32xf32>
    %c0_20 = arith.constant 0 : index
    %c0_21 = arith.constant 0 : index
    %42 = vector.load %arg11[%c0_20, %c0_21] : memref<8x32xf32, #tpu.memory_space<vmem>>, vector<8x32xf32>
    tpu.vector_store %arg11[%c0_20, %c0_21], %39 {strides = array<i32>} : memref<8x32xf32, #tpu.memory_space<vmem>>, vector<8x32xf32>,
    %43 = arith.truncf %41 : vector<8x32xf32> to vector<8x32xbf16>
    %c0_22 = arith.constant 0 : index
    %c0_23 = arith.constant 0 : index
    %44 = vector.load %arg10[%c0_22, %c0_23] : memref<8x32xbf16, #tpu.memory_space<vmem>>, vector<8x32xbf16>
    tpu.vector_store %arg10[%c0_22, %c0_23], %43 {strides = array<i32>} : memref<8x32xbf16, #tpu.memory_space<vmem>>, vector<8x32xbf16>,
    %45 = arith.index_cast %9 : i32 to index
    %c0_24 = arith.constant 0 : index
    %46 = vector.load %arg9[%45, %c0_24] : memref<32x32xbf16, #tpu.memory_space<vmem>>, vector<8x32xbf16>
    tpu.vector_store %arg9[%45, %c0_24], %43 {strides = array<i32>} : memref<32x32xbf16, #tpu.memory_space<vmem>>, vector<8x32xbf16>,
    %c1_i32 = arith.constant 1 : i32
    %c8_i32_25 = arith.constant 8 : i32
    %47 = arith.muli %c1_i32, %c8_i32_25 : i32
    %48 = tpu.assume_multiple %47, 8 : i32
    %49 = arith.index_cast %48 : i32 to index
    %c0_26 = arith.constant 0 : index
    %50 = vector.load %arg8[%49, %c0_26] : memref<32x128xf32, #tpu.memory_space<vmem>>, vector<8x128xf32>
    %c0_27 = arith.constant 0 : index
    %c0_28 = arith.constant 0 : index
    %51 = vector.load %arg10[%c0_27, %c0_28] : memref<8x32xbf16, #tpu.memory_space<vmem>>, vector<8x32xbf16>
    %c0_29 = arith.constant 0 : index
    %c0_30 = arith.constant 0 : index
    %52 = vector.load %arg4[%c0_29, %c0_30] : memref<32x128xbf16, #tpu.memory_space<vmem>>, vector<32x128xbf16>
    %cst_31 = arith.constant dense<0.000000e+00> : vector<8x128xf32>
    %53 = tpu.matmul %51, %52, %cst_31 {dimension_numbers = #tpu.dot_dimension_numbers<[1], [0], [0], [1], [0, 0, 1, 1], [], []>} : vector<8x32xbf16>, vector<32x128xbf16>, vector<8x128xf32> -> vector<8x128xf32>
    %54 = arith.addf %50, %53 : vector<8x128xf32>
    %55 = vector.extract_strided_slice %54 {offsets = [0, 0], sizes = [8, 32], strides = [1, 1]} : vector<8x128xf32> to vector<8x32xf32>
    %56 = arith.negf %55 : vector<8x32xf32>
    %57 = math.exp %56 : vector<8x32xf32>
    %cst_32 = arith.constant 1.000000e+00 : f32
    %58 = vector.broadcast %cst_32 : f32 to vector<8x32xf32>
    %59 = arith.addf %58, %57 : vector<8x32xf32>
    %60 = arith.divf %58, %59 : vector<8x32xf32>
    %61 = vector.extract_strided_slice %54 {offsets = [0, 32], sizes = [8, 32], strides = [1, 1]} : vector<8x128xf32> to vector<8x32xf32>
    %62 = arith.negf %61 : vector<8x32xf32>
    %63 = math.exp %62 : vector<8x32xf32>
    %cst_33 = arith.constant 1.000000e+00 : f32
    %64 = vector.broadcast %cst_33 : f32 to vector<8x32xf32>
    %65 = arith.addf %64, %63 : vector<8x32xf32>
    %66 = arith.divf %64, %65 : vector<8x32xf32>
    %67 = vector.extract_strided_slice %54 {offsets = [0, 64], sizes = [8, 32], strides = [1, 1]} : vector<8x128xf32> to vector<8x32xf32>
    %68 = math.tanh %67 : vector<8x32xf32>
    %69 = vector.extract_strided_slice %54 {offsets = [0, 96], sizes = [8, 32], strides = [1, 1]} : vector<8x128xf32> to vector<8x32xf32>
    %70 = arith.negf %69 : vector<8x32xf32>
    %71 = math.exp %70 : vector<8x32xf32>
    %cst_34 = arith.constant 1.000000e+00 : f32
    %72 = vector.broadcast %cst_34 : f32 to vector<8x32xf32>
    %73 = arith.addf %72, %71 : vector<8x32xf32>
    %74 = arith.divf %72, %73 : vector<8x32xf32>
    %c0_35 = arith.constant 0 : index
    %c0_36 = arith.constant 0 : index
    %75 = vector.load %arg11[%c0_35, %c0_36] : memref<8x32xf32, #tpu.memory_space<vmem>>, vector<8x32xf32>
    %76 = arith.mulf %66, %75 : vector<8x32xf32>
    %77 = arith.mulf %60, %68 : vector<8x32xf32>
    %78 = arith.addf %76, %77 : vector<8x32xf32>
    %79 = math.tanh %78 : vector<8x32xf32>
    %80 = arith.mulf %74, %79 : vector<8x32xf32>
    %c0_37 = arith.constant 0 : index
    %c0_38 = arith.constant 0 : index
    %81 = vector.load %arg11[%c0_37, %c0_38] : memref<8x32xf32, #tpu.memory_space<vmem>>, vector<8x32xf32>
    tpu.vector_store %arg11[%c0_37, %c0_38], %78 {strides = array<i32>} : memref<8x32xf32, #tpu.memory_space<vmem>>, vector<8x32xf32>,
    %82 = arith.truncf %80 : vector<8x32xf32> to vector<8x32xbf16>
    %c0_39 = arith.constant 0 : index
    %c0_40 = arith.constant 0 : index
    %83 = vector.load %arg10[%c0_39, %c0_40] : memref<8x32xbf16, #tpu.memory_space<vmem>>, vector<8x32xbf16>
    tpu.vector_store %arg10[%c0_39, %c0_40], %82 {strides = array<i32>} : memref<8x32xbf16, #tpu.memory_space<vmem>>, vector<8x32xbf16>,
    %84 = arith.index_cast %48 : i32 to index
    %c0_41 = arith.constant 0 : index
    %85 = vector.load %arg9[%84, %c0_41] : memref<32x32xbf16, #tpu.memory_space<vmem>>, vector<8x32xbf16>
    tpu.vector_store %arg9[%84, %c0_41], %82 {strides = array<i32>} : memref<32x32xbf16, #tpu.memory_space<vmem>>, vector<8x32xbf16>,
    %c2_i32 = arith.constant 2 : i32
    %c8_i32_42 = arith.constant 8 : i32
    %86 = arith.muli %c2_i32, %c8_i32_42 : i32
    %87 = tpu.assume_multiple %86, 8 : i32
    %88 = arith.index_cast %87 : i32 to index
    %c0_43 = arith.constant 0 : index
    %89 = vector.load %arg8[%88, %c0_43] : memref<32x128xf32, #tpu.memory_space<vmem>>, vector<8x128xf32>
    %c0_44 = arith.constant 0 : index
    %c0_45 = arith.constant 0 : index
    %90 = vector.load %arg10[%c0_44, %c0_45] : memref<8x32xbf16, #tpu.memory_space<vmem>>, vector<8x32xbf16>
    %c0_46 = arith.constant 0 : index
    %c0_47 = arith.constant 0 : index
    %91 = vector.load %arg4[%c0_46, %c0_47] : memref<32x128xbf16, #tpu.memory_space<vmem>>, vector<32x128xbf16>
    %cst_48 = arith.constant dense<0.000000e+00> : vector<8x128xf32>
    %92 = tpu.matmul %90, %91, %cst_48 {dimension_numbers = #tpu.dot_dimension_numbers<[1], [0], [0], [1], [0, 0, 1, 1], [], []>} : vector<8x32xbf16>, vector<32x128xbf16>, vector<8x128xf32> -> vector<8x128xf32>
    %93 = arith.addf %89, %92 : vector<8x128xf32>
    %94 = vector.extract_strided_slice %93 {offsets = [0, 0], sizes = [8, 32], strides = [1, 1]} : vector<8x128xf32> to vector<8x32xf32>
    %95 = arith.negf %94 : vector<8x32xf32>
    %96 = math.exp %95 : vector<8x32xf32>
    %cst_49 = arith.constant 1.000000e+00 : f32
    %97 = vector.broadcast %cst_49 : f32 to vector<8x32xf32>
    %98 = arith.addf %97, %96 : vector<8x32xf32>
    %99 = arith.divf %97, %98 : vector<8x32xf32>
    %100 = vector.extract_strided_slice %93 {offsets = [0, 32], sizes = [8, 32], strides = [1, 1]} : vector<8x128xf32> to vector<8x32xf32>
    %101 = arith.negf %100 : vector<8x32xf32>
    %102 = math.exp %101 : vector<8x32xf32>
    %cst_50 = arith.constant 1.000000e+00 : f32
    %103 = vector.broadcast %cst_50 : f32 to vector<8x32xf32>
    %104 = arith.addf %103, %102 : vector<8x32xf32>
    %105 = arith.divf %103, %104 : vector<8x32xf32>
    %106 = vector.extract_strided_slice %93 {offsets = [0, 64], sizes = [8, 32], strides = [1, 1]} : vector<8x128xf32> to vector<8x32xf32>
    %107 = math.tanh %106 : vector<8x32xf32>
    %108 = vector.extract_strided_slice %93 {offsets = [0, 96], sizes = [8, 32], strides = [1, 1]} : vector<8x128xf32> to vector<8x32xf32>
    %109 = arith.negf %108 : vector<8x32xf32>
    %110 = math.exp %109 : vector<8x32xf32>
    %cst_51 = arith.constant 1.000000e+00 : f32
    %111 = vector.broadcast %cst_51 : f32 to vector<8x32xf32>
    %112 = arith.addf %111, %110 : vector<8x32xf32>
    %113 = arith.divf %111, %112 : vector<8x32xf32>
    %c0_52 = arith.constant 0 : index
    %c0_53 = arith.constant 0 : index
    %114 = vector.load %arg11[%c0_52, %c0_53] : memref<8x32xf32, #tpu.memory_space<vmem>>, vector<8x32xf32>
    %115 = arith.mulf %105, %114 : vector<8x32xf32>
    %116 = arith.mulf %99, %107 : vector<8x32xf32>
    %117 = arith.addf %115, %116 : vector<8x32xf32>
    %118 = math.tanh %117 : vector<8x32xf32>
    %119 = arith.mulf %113, %118 : vector<8x32xf32>
    %c0_54 = arith.constant 0 : index
    %c0_55 = arith.constant 0 : index
    %120 = vector.load %arg11[%c0_54, %c0_55] : memref<8x32xf32, #tpu.memory_space<vmem>>, vector<8x32xf32>
    tpu.vector_store %arg11[%c0_54, %c0_55], %117 {strides = array<i32>} : memref<8x32xf32, #tpu.memory_space<vmem>>, vector<8x32xf32>,
    %121 = arith.truncf %119 : vector<8x32xf32> to vector<8x32xbf16>
    %c0_56 = arith.constant 0 : index
    %c0_57 = arith.constant 0 : index
    %122 = vector.load %arg10[%c0_56, %c0_57] : memref<8x32xbf16, #tpu.memory_space<vmem>>, vector<8x32xbf16>
    tpu.vector_store %arg10[%c0_56, %c0_57], %121 {strides = array<i32>} : memref<8x32xbf16, #tpu.memory_space<vmem>>, vector<8x32xbf16>,
    %123 = arith.index_cast %87 : i32 to index
    %c0_58 = arith.constant 0 : index
    %124 = vector.load %arg9[%123, %c0_58] : memref<32x32xbf16, #tpu.memory_space<vmem>>, vector<8x32xbf16>
    tpu.vector_store %arg9[%123, %c0_58], %121 {strides = array<i32>} : memref<32x32xbf16, #tpu.memory_space<vmem>>, vector<8x32xbf16>,
    %c3_i32 = arith.constant 3 : i32
    %c8_i32_59 = arith.constant 8 : i32
    %125 = arith.muli %c3_i32, %c8_i32_59 : i32
    %126 = tpu.assume_multiple %125, 8 : i32
    %127 = arith.index_cast %126 : i32 to index
    %c0_60 = arith.constant 0 : index
    %128 = vector.load %arg8[%127, %c0_60] : memref<32x128xf32, #tpu.memory_space<vmem>>, vector<8x128xf32>
    %c0_61 = arith.constant 0 : index
    %c0_62 = arith.constant 0 : index
    %129 = vector.load %arg10[%c0_61, %c0_62] : memref<8x32xbf16, #tpu.memory_space<vmem>>, vector<8x32xbf16>
    %c0_63 = arith.constant 0 : index
    %c0_64 = arith.constant 0 : index
    %130 = vector.load %arg4[%c0_63, %c0_64] : memref<32x128xbf16, #tpu.memory_space<vmem>>, vector<32x128xbf16>
    %cst_65 = arith.constant dense<0.000000e+00> : vector<8x128xf32>
    %131 = tpu.matmul %129, %130, %cst_65 {dimension_numbers = #tpu.dot_dimension_numbers<[1], [0], [0], [1], [0, 0, 1, 1], [], []>} : vector<8x32xbf16>, vector<32x128xbf16>, vector<8x128xf32> -> vector<8x128xf32>
    %132 = arith.addf %128, %131 : vector<8x128xf32>
    %133 = vector.extract_strided_slice %132 {offsets = [0, 0], sizes = [8, 32], strides = [1, 1]} : vector<8x128xf32> to vector<8x32xf32>
    %134 = arith.negf %133 : vector<8x32xf32>
    %135 = math.exp %134 : vector<8x32xf32>
    %cst_66 = arith.constant 1.000000e+00 : f32
    %136 = vector.broadcast %cst_66 : f32 to vector<8x32xf32>
    %137 = arith.addf %136, %135 : vector<8x32xf32>
    %138 = arith.divf %136, %137 : vector<8x32xf32>
    %139 = vector.extract_strided_slice %132 {offsets = [0, 32], sizes = [8, 32], strides = [1, 1]} : vector<8x128xf32> to vector<8x32xf32>
    %140 = arith.negf %139 : vector<8x32xf32>
    %141 = math.exp %140 : vector<8x32xf32>
    %cst_67 = arith.constant 1.000000e+00 : f32
    %142 = vector.broadcast %cst_67 : f32 to vector<8x32xf32>
    %143 = arith.addf %142, %141 : vector<8x32xf32>
    %144 = arith.divf %142, %143 : vector<8x32xf32>
    %145 = vector.extract_strided_slice %132 {offsets = [0, 64], sizes = [8, 32], strides = [1, 1]} : vector<8x128xf32> to vector<8x32xf32>
    %146 = math.tanh %145 : vector<8x32xf32>
    %147 = vector.extract_strided_slice %132 {offsets = [0, 96], sizes = [8, 32], strides = [1, 1]} : vector<8x128xf32> to vector<8x32xf32>
    %148 = arith.negf %147 : vector<8x32xf32>
    %149 = math.exp %148 : vector<8x32xf32>
    %cst_68 = arith.constant 1.000000e+00 : f32
    %150 = vector.broadcast %cst_68 : f32 to vector<8x32xf32>
    %151 = arith.addf %150, %149 : vector<8x32xf32>
    %152 = arith.divf %150, %151 : vector<8x32xf32>
    %c0_69 = arith.constant 0 : index
    %c0_70 = arith.constant 0 : index
    %153 = vector.load %arg11[%c0_69, %c0_70] : memref<8x32xf32, #tpu.memory_space<vmem>>, vector<8x32xf32>
    %154 = arith.mulf %144, %153 : vector<8x32xf32>
    %155 = arith.mulf %138, %146 : vector<8x32xf32>
    %156 = arith.addf %154, %155 : vector<8x32xf32>
    %157 = math.tanh %156 : vector<8x32xf32>
    %158 = arith.mulf %152, %157 : vector<8x32xf32>
    %c0_71 = arith.constant 0 : index
    %c0_72 = arith.constant 0 : index
    %159 = vector.load %arg11[%c0_71, %c0_72] : memref<8x32xf32, #tpu.memory_space<vmem>>, vector<8x32xf32>
    tpu.vector_store %arg11[%c0_71, %c0_72], %156 {strides = array<i32>} : memref<8x32xf32, #tpu.memory_space<vmem>>, vector<8x32xf32>,
    %160 = arith.truncf %158 : vector<8x32xf32> to vector<8x32xbf16>
    %c0_73 = arith.constant 0 : index
    %c0_74 = arith.constant 0 : index
    %161 = vector.load %arg10[%c0_73, %c0_74] : memref<8x32xbf16, #tpu.memory_space<vmem>>, vector<8x32xbf16>
    tpu.vector_store %arg10[%c0_73, %c0_74], %160 {strides = array<i32>} : memref<8x32xbf16, #tpu.memory_space<vmem>>, vector<8x32xbf16>,
    %162 = arith.index_cast %126 : i32 to index
    %c0_75 = arith.constant 0 : index
    %163 = vector.load %arg9[%162, %c0_75] : memref<32x32xbf16, #tpu.memory_space<vmem>>, vector<8x32xbf16>
    tpu.vector_store %arg9[%162, %c0_75], %160 {strides = array<i32>} : memref<32x32xbf16, #tpu.memory_space<vmem>>, vector<8x32xbf16>,
    %c4_i32 = arith.constant 4 : i32
    %c0_76 = arith.constant 0 : index
    %c0_77 = arith.constant 0 : index
    %164 = vector.load %arg9[%c0_76, %c0_77] : memref<32x32xbf16, #tpu.memory_space<vmem>>, vector<32x32xbf16>
    %c0_78 = arith.constant 0 : index
    %c0_79 = arith.constant 0 : index
    %165 = vector.load %arg5[%c0_78, %c0_79] : memref<32x8xbf16, #tpu.memory_space<vmem>>, vector<32x8xbf16>
    %cst_80 = arith.constant dense<0.000000e+00> : vector<32x8xf32>
    %166 = tpu.matmul %164, %165, %cst_80 {dimension_numbers = #tpu.dot_dimension_numbers<[1], [0], [0], [1], [0, 0, 1, 1], [], []>} : vector<32x32xbf16>, vector<32x8xbf16>, vector<32x8xf32> -> vector<32x8xf32>
    %c0_81 = arith.constant 0 : index
    %c0_82 = arith.constant 0 : index
    %167 = vector.load %arg6[%c0_81, %c0_82] : memref<1x8xf32, #tpu.memory_space<vmem>>, vector<1x8xf32>
    %168 = vector.broadcast %167 : vector<1x8xf32> to vector<32x8xf32>
    %169 = arith.addf %166, %168 : vector<32x8xf32>
    %cst_83 = arith.constant dense<0xFF800000> : vector<32xf32>
    %170 = vector.multi_reduction <maximumf>, %169, %cst_83 [1] : vector<32x8xf32> to vector<32xf32>
    %171 = vector.shape_cast %170 : vector<32xf32> to vector<32x1xf32>
    %172 = vector.broadcast %171 : vector<32x1xf32> to vector<32x8xf32>
    %173 = arith.subf %169, %172 : vector<32x8xf32>
    %174 = math.exp %173 : vector<32x8xf32>
    %cst_84 = arith.constant dense<0.000000e+00> : vector<32xf32>
    %175 = vector.multi_reduction <add>, %174, %cst_84 [1] : vector<32x8xf32> to vector<32xf32>
    %176 = vector.shape_cast %175 : vector<32xf32> to vector<32x1xf32>
    %177 = vector.broadcast %176 : vector<32x1xf32> to vector<32x8xf32>
    %178 = arith.divf %174, %177 : vector<32x8xf32>
    %c0_85 = arith.constant 0 : index
    %c0_86 = arith.constant 0 : index
    %c0_87 = arith.constant 0 : index
    %c0_88 = arith.constant 0 : index
    %179 = vector.load %arg7[%c0_85, %c0_86, %c0_87, %c0_88] : memref<1x1x32x8xf32, #tpu.memory_space<vmem>>, vector<1x1x32x8xf32>
    %180 = vector.shape_cast %179 : vector<1x1x32x8xf32> to vector<32x8xf32>
    %181 = vector.shape_cast %178 : vector<32x8xf32> to vector<1x1x32x8xf32>
    tpu.vector_store %arg7[%c0_85, %c0_86, %c0_87, %c0_88], %181 {strides = array<i32>} : memref<1x1x32x8xf32, #tpu.memory_space<vmem>>, vector<1x1x32x8xf32>,
    return
  }
  func.func @transform_0(%arg0: i32, %arg1: i32) -> (i32, i32, i32, i32) {
    %c0_i32 = arith.constant 0 : i32
    %c0_i32_0 = arith.constant 0 : i32
    %c0_i32_1 = arith.constant 0 : i32
    return %arg0, %arg1, %c0_i32, %c0_i32_0 : i32, i32, i32, i32
  }
  func.func @transform_1(%arg0: i32, %arg1: i32) -> (i32, i32) {
    %c0_i32 = arith.constant 0 : i32
    %c0_i32_0 = arith.constant 0 : i32
    %c0_i32_1 = arith.constant 0 : i32
    return %c0_i32, %c0_i32_0 : i32, i32
  }
  func.func @transform_2(%arg0: i32, %arg1: i32) -> (i32, i32) {
    %c0_i32 = arith.constant 0 : i32
    %c0_i32_0 = arith.constant 0 : i32
    %c0_i32_1 = arith.constant 0 : i32
    return %c0_i32, %c0_i32_0 : i32, i32
  }
  func.func @transform_3(%arg0: i32, %arg1: i32) -> (i32, i32) {
    %c0_i32 = arith.constant 0 : i32
    %c0_i32_0 = arith.constant 0 : i32
    %c0_i32_1 = arith.constant 0 : i32
    return %c0_i32, %c0_i32_0 : i32, i32
  }
  func.func @transform_4(%arg0: i32, %arg1: i32) -> (i32, i32) {
    %c0_i32 = arith.constant 0 : i32
    %c0_i32_0 = arith.constant 0 : i32
    %c0_i32_1 = arith.constant 0 : i32
    return %c0_i32, %c0_i32_0 : i32, i32
  }
  func.func @transform_5(%arg0: i32, %arg1: i32) -> (i32, i32, i32, i32) {
    %c0_i32 = arith.constant 0 : i32
    %c0_i32_0 = arith.constant 0 : i32
    %c0_i32_1 = arith.constant 0 : i32
    return %arg0, %arg1, %c0_i32, %c0_i32_0 : i32, i32, i32, i32
  }
}

</mosaic_0001>

<llo_original>
// kernel: tpu_custom_call.1
$region0: #{tpu_custom_call.1}
  #allocation0 [shape = 'u32[]', space=smem, size = 0x4, offset = 0x4, fixed_abs, tag = 'smem constant byte address 0x4 - core index']
  #allocation1 [shape = 'u32[144,128]{1,0:T(1,128)}', space=vmem, size = 0x12000, scoped, tag = 'internal scratch']
  #allocation2 [shape = 'f32[32,128]{1,0:T(8,128)}', space=vmem, size = 0x4000, scoped, tag = 'scratch operand']
  #allocation3 [shape = 'bf16[32,32]{1,0:T(8,128)(2,1)}', space=vmem, size = 0x2000, scoped, tag = 'scratch operand']
  #allocation4 [shape = 'bf16[8,32]{1,0:T(8,128)(2,1)}', space=vmem, size = 0x800, scoped, tag = 'scratch operand']
  #allocation5 [shape = 'f32[8,32]{1,0:T(8,128)}', space=vmem, size = 0x1000, scoped, tag = 'scratch operand']
  %s0 = inlined_call_operand.vmem [shape: bf16[1,2,32,13], index: 0, kind: input, shape index: {}]
  %s1 = inlined_call_operand.vmem [shape: bf16[13,128], index: 1, kind: input, shape index: {}]
  %s2 = inlined_call_operand.vmem [shape: bf16[32,128], index: 2, kind: input, shape index: {}]
  %s3 = inlined_call_operand.vmem [shape: bf16[32,8], index: 3, kind: input, shape index: {}]
  %s4 = inlined_call_operand.vmem [shape: f32[1,8], index: 4, kind: input, shape index: {}]
  %s5 = inlined_call_operand.vmem [shape: f32[1,2,32,8], index: 5, kind: output, shape index: {}]
  %s6 = sld [smem:[#allocation0]]
  $region57: #{tpu_custom_call.1} parent=0
    _
  %s8 = ssub.s32 1, %s6
  %s9 = scalar_select 0, %s8, %s6
  loop: start=0, step=1, limit=4
  $region2: #{tpu_custom_call.1} parent=0 // loop_pre_header
    _
  $region3: #{tpu_custom_call.1} parent=0 // loop_header
    %s11 = sphi 0, %s15
    %p12 = scmp.ge.s32.totalorder %s11, 4
    %s18 = sphi 0, %s30
    %s19 = sphi 0, %s26
    %s20 = sphi 0, %s18
    %s21 = sphi 0, %s19
    %s22 = sphi 0, %s20
    %s23 = sphi 0, %s21
    %s35 = sphi 0, %s37
    %s38 = sphi 0, %s35
    %s39 = sphi 0, %s38
    %s55 = sphi 0, %s39
    %s59 = sphi 0, %s59
    %s61 = sphi 0, %s59
    %s62 = sphi 0, %s61
    %s76 = sphi 0, %s62
    %s80 = sphi 0, %s80
    %s82 = sphi 0, %s80
    %s83 = sphi 0, %s82
    %s97 = sphi 0, %s83
    %s101 = sphi 0, %s101
    %s103 = sphi 0, %s101
    %s104 = sphi 0, %s103
    %s118 = sphi 0, %s104
    %s122 = sphi 0, %s122
    %s124 = sphi 0, %s122
    %s125 = sphi 0, %s124
    %s139 = sphi 0, %s125
    %s147 = sphi 0, %s149
    %s150 = sphi 0, %s147
    %s151 = sphi 0, %s150
    %s167 = sphi 0, %s151
  $region4: #{tpu_custom_call.1} parent=0 // loop_header_branch
    %14 = sbr.rel (%p12) target = $region8
  $region5: #{tpu_custom_call.1} parent=0 // loop_body
    %s16 = ssub.s32 %s11, 1
    %s17 = ssub.s32 %s11, 2
    %s24 = sadd.s32 1, %s19
    %p25 = scmp.ge.s32.totalorder %s24, 2
    %s26 = scalar_select %p25, 0, %s24
    %s27 = sadd.s32 1, %s18
    %s28 = scalar_select %p25, %s27, %s18
    %p29 = scmp.ge.s32.totalorder %s28, 1
    %s30 = scalar_select %p29, 0, %s28
    %s31 = ssub.s32 %s18, %s30
    %s32 = ssub.s32 %s19, %s26
    %s33 = sor.u32 %s31, %s32
    %p34 = scmp.eq.s32.totalorder %s33, 0
    %s36 = sadd.s32 %s35, 1
    %s37 = scalar_select %p34, %s35, %s36
    %p40 = pneg %p34
    %p41 = scmp.eq.s32.totalorder %s11, 1
    %p42 = por %p40, %p41
    %p43 = scmp.ne.s32.totalorder %s35, %s38
    %p44 = scmp.eq.s32.totalorder %s11, 0
    %p45 = por %p43, %p44
    %p46 = scmp.ne.s32.totalorder %s35, %s38
    %p47 = scmp.eq.s32.totalorder %s16, 1
    %p48 = por %p46, %p47
    %p49 = scmp.ne.s32.totalorder %s38, %s39
    %p50 = scmp.eq.s32.totalorder %s16, 0
    %p51 = por %p49, %p50
    %p52 = scmp.ne.s32.totalorder %s38, %s39
    %p53 = scmp.eq.s32.totalorder %s17, 1
    %p54 = por %p52, %p53
    %p56 = scmp.ne.s32.totalorder %s39, %s55
    %p57 = scmp.eq.s32.totalorder %s17, 0
    %p58 = por %p56, %p57
    %s60 = sadd.s32 %s59, 1
    %p63 = scmp.eq.s32.totalorder %s11, 1
    %p64 = scmp.ne.s32.totalorder %s59, %s61
    %p65 = scmp.eq.s32.totalorder %s11, 0
    %p66 = por %p64, %p65
    %p67 = scmp.ne.s32.totalorder %s59, %s61
    %p68 = scmp.eq.s32.totalorder %s16, 1
    %p69 = por %p67, %p68
    %p70 = scmp.ne.s32.totalorder %s61, %s62
    %p71 = scmp.eq.s32.totalorder %s16, 0
    %p72 = por %p70, %p71
    %p73 = scmp.ne.s32.totalorder %s61, %s62
    %p74 = scmp.eq.s32.totalorder %s17, 1
    %p75 = por %p73, %p74
    %p77 = scmp.ne.s32.totalorder %s62, %s76
    %p78 = scmp.eq.s32.totalorder %s17, 0
    %p79 = por %p77, %p78
    %s81 = sadd.s32 %s80, 1
    %p84 = scmp.eq.s32.totalorder %s11, 1
    %p85 = scmp.ne.s32.totalorder %s80, %s82
    %p86 = scmp.eq.s32.totalorder %s11, 0
    %p87 = por %p85, %p86
    %p88 = scmp.ne.s32.totalorder %s80, %s82
    %p89 = scmp.eq.s32.totalorder %s16, 1
    %p90 = por %p88, %p89
    %p91 = scmp.ne.s32.totalorder %s82, %s83
    %p92 = scmp.eq.s32.totalorder %s16, 0
    %p93 = por %p91, %p92
    %p94 = scmp.ne.s32.totalorder %s82, %s83
    %p95 = scmp.eq.s32.totalorder %s17, 1
    %p96 = por %p94, %p95
    %p98 = scmp.ne.s32.totalorder %s83, %s97
    %p99 = scmp.eq.s32.totalorder %s17, 0
    %p100 = por %p98, %p99
    %s102 = sadd.s32 %s101, 1
    %p105 = scmp.eq.s32.totalorder %s11, 1
    %p106 = scmp.ne.s32.totalorder %s101, %s103
    %p107 = scmp.eq.s32.totalorder %s11, 0
    %p108 = por %p106, %p107
    %p109 = scmp.ne.s32.totalorder %s101, %s103
    %p110 = scmp.eq.s32.totalorder %s16, 1
    %p111 = por %p109, %p110
    %p112 = scmp.ne.s32.totalorder %s103, %s104
    %p113 = scmp.eq.s32.totalorder %s16, 0
    %p114 = por %p112, %p113
    %p115 = scmp.ne.s32.totalorder %s103, %s104
    %p116 = scmp.eq.s32.totalorder %s17, 1
    %p117 = por %p115, %p116
    %p119 = scmp.ne.s32.totalorder %s104, %s118
    %p120 = scmp.eq.s32.totalorder %s17, 0
    %p121 = por %p119, %p120
    %s123 = sadd.s32 %s122, 1
    %p126 = scmp.eq.s32.totalorder %s11, 1
    %p127 = scmp.ne.s32.totalorder %s122, %s124
    %p128 = scmp.eq.s32.totalorder %s11, 0
    %p129 = por %p127, %p128
    %p130 = scmp.ne.s32.totalorder %s122, %s124
    %p131 = scmp.eq.s32.totalorder %s16, 1
    %p132 = por %p130, %p131
    %p133 = scmp.ne.s32.totalorder %s124, %s125
    %p134 = scmp.eq.s32.totalorder %s16, 0
    %p135 = por %p133, %p134
    %p136 = scmp.ne.s32.totalorder %s124, %s125
    %p137 = scmp.eq.s32.totalorder %s17, 1
    %p138 = por %p136, %p137
    %p140 = scmp.ne.s32.totalorder %s125, %s139
    %p141 = scmp.eq.s32.totalorder %s17, 0
    %p142 = por %p140, %p141
    %s143 = ssub.s32 %s18, %s30
    %s144 = ssub.s32 %s19, %s26
    %s145 = sor.u32 %s143, %s144
    %p146 = scmp.eq.s32.totalorder %s145, 0
    %s148 = sadd.s32 %s147, 1
    %s149 = scalar_select %p146, %s147, %s148
    %p152 = pneg %p146
    %p153 = scmp.eq.s32.totalorder %s11, 1
    %p154 = por %p152, %p153
    %p155 = scmp.ne.s32.totalorder %s147, %s150
    %p156 = scmp.eq.s32.totalorder %s11, 0
    %p157 = por %p155, %p156
    %p158 = scmp.ne.s32.totalorder %s147, %s150
    %p159 = scmp.eq.s32.totalorder %s16, 1
    %p160 = por %p158, %p159
    %p161 = scmp.ne.s32.totalorder %s150, %s151
    %p162 = scmp.eq.s32.totalorder %s16, 0
    %p163 = por %p161, %p162
    %p164 = scmp.ne.s32.totalorder %s150, %s151
    %p165 = scmp.eq.s32.totalorder %s17, 1
    %p166 = por %p164, %p165
    %p168 = scmp.ne.s32.totalorder %s151, %s167
    %p169 = scmp.eq.s32.totalorder %s17, 0
    %p170 = por %p168, %p169
    %p171 = scmp.le.s32.totalorder 1, %s11
    %p172 = scmp.lt.s32.totalorder %s11, 3
    %p173 = pnand %p171, %p172
    %p174 = pneg %p173
    // Predicated region
    $region9: #{tpu_custom_call.1} parent=5 // pred_check
      _
    $region10: #{tpu_custom_call.1} parent=5 // pred_check_branch
      %176 = sbr.rel (%p173) target = $region12
    $region11: #{tpu_custom_call.1} parent=5 // pred_region
      %s177 = ssub.s32 %s11, 1
      // Predicated region
      $region13: #{tpu_custom_call.1} parent=11 // pred_check
        %p178 = pneg %p72
      $region14: #{tpu_custom_call.1} parent=11 // pred_check_branch
        %180 = sbr.rel (%p178) target = $region16
      $region15: #{tpu_custom_call.1} parent=11 // pred_region
        _
      $region16: #{tpu_custom_call.1} parent=11 // pred_fallthru
        _
      // Predicated region
      $region17: #{tpu_custom_call.1} parent=11 // pred_check
        %p181 = pneg %p93
      $region18: #{tpu_custom_call.1} parent=11 // pred_check_branch
        %183 = sbr.rel (%p181) target = $region20
      $region19: #{tpu_custom_call.1} parent=11 // pred_region
        _
      $region20: #{tpu_custom_call.1} parent=11 // pred_fallthru
        _
      // Predicated region
      $region21: #{tpu_custom_call.1} parent=11 // pred_check
        %p184 = pneg %p114
      $region22: #{tpu_custom_call.1} parent=11 // pred_check_branch
        %186 = sbr.rel (%p184) target = $region24
      $region23: #{tpu_custom_call.1} parent=11 // pred_region
        _
      $region24: #{tpu_custom_call.1} parent=11 // pred_fallthru
        _
      // Predicated region
      $region25: #{tpu_custom_call.1} parent=11 // pred_check
        %p187 = pneg %p135
      $region26: #{tpu_custom_call.1} parent=11 // pred_check_branch
        %189 = sbr.rel (%p187) target = $region28
      $region27: #{tpu_custom_call.1} parent=11 // pred_region
        _
      $region28: #{tpu_custom_call.1} parent=11 // pred_fallthru
        _
    $region12: #{tpu_custom_call.1} parent=5 // pred_fallthru
      _
    %p190 = scmp.lt.s32.totalorder %s11, 2
    // Predicated region
    $region29: #{tpu_custom_call.1} parent=5 // pred_check
      %p191 = pneg %p190
    $region30: #{tpu_custom_call.1} parent=5 // pred_check_branch
      %193 = sbr.rel (%p191) target = $region32
    $region31: #{tpu_custom_call.1} parent=5 // pred_region
      // Predicated region
      $region33: #{tpu_custom_call.1} parent=31 // pred_check
        %p194 = pneg %p45
      $region34: #{tpu_custom_call.1} parent=31 // pred_check_branch
        %196 = sbr.rel (%p194) target = $region36
      $region35: #{tpu_custom_call.1} parent=31 // pred_region
        %p197 = scmp.lt.s32.totalorder %s18, 0
        %s198 = scalar_select %p197, %s18, 0
        %p199 = scmp.lt.s32.totalorder %s19, 1
        %s200 = scalar_select %p199, %s19, 1
        %s201 = smul.addr %s200, 4
        %s202 = smul.addr %s198, 8
        %s203 = sadd.s32 %s201, %s202
        %s204 = smul.addr %s203, 4
        %s205 = scalar_lea.vmem %s0, %s204
      $region36: #{tpu_custom_call.1} parent=31 // pred_fallthru
        _
    $region32: #{tpu_custom_call.1} parent=5 // pred_fallthru
      _
    %p206 = scmp.le.s32.totalorder 1, %s11
    %p207 = scmp.lt.s32.totalorder %s11, 3
    %p208 = pnand %p206, %p207
    %p209 = pneg %p208
    // Predicated region
    $region37: #{tpu_custom_call.1} parent=5 // pred_check
      _
    $region38: #{tpu_custom_call.1} parent=5 // pred_check_branch
      %211 = sbr.rel (%p208) target = $region40
    $region39: #{tpu_custom_call.1} parent=5 // pred_region
      %s212 = ssub.s32 %s11, 1
      %p213 = scmp.lt.s32.totalorder %s20, 0
      %s214 = scalar_select %p213, %s20, 0
      %p215 = scmp.lt.s32.totalorder %s21, 1
      %s216 = scalar_select %p215, %s21, 1
      %s217 = smul.addr %s216, 4
      %s218 = smul.addr %s214, 8
      %s219 = sadd.s32 %s217, %s218
      %s220 = smul.addr %s219, 4
      %s221 = scalar_lea.vmem %s0, %s220
      %p222 = pneg %p51
      %p223 = pneg %p48
      %p224 = pneg %p72
      %p225 = pneg %p69
      %p226 = pneg %p93
      %p227 = pneg %p90
      %p228 = pneg %p114
      %p229 = pneg %p111
      %p230 = pneg %p135
      %p231 = pneg %p132
      %p232 = pneg %p163
      %p233 = pneg %p160
      %p234 = scmp.lt.s32.totalorder %s20, 0
      %s235 = scalar_select %p234, %s20, 0
      %p236 = scmp.lt.s32.totalorder %s21, 1
      %s237 = scalar_select %p236, %s21, 1
      %s238 = smul.addr %s237, 4
      %s239 = smul.addr %s235, 8
      %s240 = sadd.s32 %s238, %s239
      %s241 = smul.addr %s240, 8
      %s242 = scalar_lea.vmem %s5, %s241
      %p243 = scmp.lt.s32.totalorder %s20, 0
      %s244 = scalar_select %p243, %s20, 0
      %p245 = scmp.lt.s32.totalorder %s21, 1
      %s246 = scalar_select %p245, %s21, 1
      %s247 = smul.addr %s246, 4
      %s248 = smul.addr %s244, 8
      %s249 = sadd.s32 %s247, %s248
      %s250 = smul.addr %s249, 4
      %s251 = scalar_lea.vmem %s0, %s250
      %p252 = scmp.lt.s32.totalorder %s20, 0
      %s253 = scalar_select %p252, %s20, 0
      %p254 = scmp.lt.s32.totalorder %s21, 1
      %s255 = scalar_select %p254, %s21, 1
      %s256 = smul.addr %s255, 4
      %s257 = smul.addr %s253, 8
      %s258 = sadd.s32 %s256, %s257
      %s259 = smul.addr %s258, 8
      %s260 = scalar_lea.vmem %s5, %s259
      %p262 = scmp.eq.s32.totalorder %s21, 0
      // Predicated region
      $region41: #{tpu_custom_call.1} parent=39 // pred_check
        %p263 = pneg %p262
      $region42: #{tpu_custom_call.1} parent=39 // pred_check_branch
        %265 = sbr.rel (%p263) target = $region44
      $region43: #{tpu_custom_call.1} parent=39 // pred_region
        %vm266 = vcmask 257024
        %267 = vst.msk [vmem:[#allocation4] sm:$0xf] %vm266, 0
        %vm268 = vcmask 261120
        %269 = vst.msk [vmem:[#allocation5] sm:$0xff] %vm268, 0.0
      $region44: #{tpu_custom_call.1} parent=39 // pred_fallthru
        _
      %v270 = vld [vmem:[%s251] sm:$0xf]
      %v271 = vld [vmem:[%s251 + $0x4] sm:$0xf]
      %v272 = vld [vmem:[%s251 + $0x8] sm:$0xf]
      %v273 = vld [vmem:[%s251 + $0xc] sm:$0xf]
      %v274 = vld [vmem:[%s1] sm:$0xf]
      %v275 = vld [vmem:[%s1 + $0x4] sm:$0x7]
      %v280 = vunpack.c.l.b16 %v270
      %v281 = vunpack.c.l.b16 %v271
      %v282 = vunpack.c.l.b16 %v272
      %v283 = vunpack.c.l.b16 %v273
      %v284 = vpack.c.b16 %v281, %v280
      %v285 = vpack.c.b16 %v283, %v282
      %v288 = vunpack.c.l.b16 %v274
      %v289 = vunpack.c.l.b16 %v275
      %v290 = vpack.c.b16 %v289, %v288
      %vm291 = vcmask 105472
      %v293 = vsel %vm291, %v284, 0
      %v296 = vsel %vm291, %v285, 0
      %vm298 = vcmask 1045504
      %vm299 = vcmask 1046528
      %v300 = vsel %vm298, 4294967295, 65535
      %v301 = vsel %vm299, %v300, 0
      %v303 = vand.u32 %v290, %v301
      %305 = vmatprep.subr.bf16.mxu0 0
      %306 = vmatpush1.bf16.msra.mxu0 0
      %307 = vmatprep.subr.bf16.mxu0 0
      %308 = vmatpush1.bf16.msra.mxu0 0
      %309 = vmatprep.subr.bf16.mxu0 0
      %310 = vmatpush1.bf16.msra.mxu0 0
      %311 = vmatprep.subr.bf16.mxu0 0
      %312 = vmatpush1.bf16.msra.mxu0 0
      %313 = vmatprep.subr.bf16.mxu0 0
      %314 = vmatpush1.bf16.msra.mxu0 0
      %315 = vmatprep.subr.bf16.mxu0 0
      %316 = vmatpush1.bf16.msra.mxu0 0
      %317 = vmatprep.subr.bf16.mxu0 0
      %318 = vmatpush1.bf16.msra.mxu0 0
      %319 = vmatprep.subr.bf16.mxu0 0
      %320 = vmatpush1.bf16.msra.mxu0 %v303
      %321 = vmatprep.subr.bf16.mxu0 0
      %322 = vmatpush2.bf16.msra.mxu0 0
      %323 = vmatprep.subr.bf16.mxu0 0
      %324 = vmatpush2.bf16.msra.mxu0 0
      %325 = vmatprep.subr.bf16.mxu0 0
      %326 = vmatpush2.bf16.msra.mxu0 0
      %327 = vmatprep.subr.bf16.mxu0 0
      %328 = vmatpush2.bf16.msra.mxu0 0
      %329 = vmatprep.subr.bf16.mxu0 0
      %330 = vmatpush2.bf16.msra.mxu0 0
      %331 = vmatprep.subr.bf16.mxu0 0
      %332 = vmatpush2.bf16.msra.mxu0 0
      %333 = vmatprep.subr.bf16.mxu0 0
      %334 = vmatpush2.bf16.msra.mxu0 0
      %335 = vmatprep.subr.bf16.mxu0 0
      %336 = vmatpush2.bf16.msra.mxu0 0
      %337 = vmatprep.mubr.bf16.mxu0 0
      %338 = vmatmul.mubr.bf16.gmra.mxu0 %v293
      %v339 = vpop.f32.mrf.mxu0
      %v340 = vadd.f32 0.0, %v339
      %v341 = vpop.f32.mrf.mxu0
      %v342 = vpop.f32.mrf.mxu0
      %v343 = vadd.f32 0.0, %v342
      %v344 = vpop.f32.mrf.mxu0
      %345 = vmatprep.mubr.bf16.mxu0 0
      %346 = vmatmul.mubr.bf16.gmra.mxu0 %v296
      %v347 = vpop.f32.mrf.mxu0
      %v348 = vadd.f32 0.0, %v347
      %v349 = vpop.f32.mrf.mxu0
      %v350 = vpop.f32.mrf.mxu0
      %v351 = vadd.f32 0.0, %v350
      %v352 = vpop.f32.mrf.mxu0
      %353 = vdwg.mxu0
      %354 = vst [vmem:[#allocation2] sm:$0xff] %v340
      %355 = vst [vmem:[#allocation2 + $0x8] sm:$0xff] %v343
      %356 = vst [vmem:[#allocation2 + $0x10] sm:$0xff] %v348
      %357 = vst [vmem:[#allocation2 + $0x18] sm:$0xff] %v351
      %v358 = vld [vmem:[#allocation2] sm:$0xff]
      %v359 = vld [vmem:[#allocation4] sm:$0xf]
      %v360 = vld [vmem:[%s2] sm:$0xf]
      %v361 = vld [vmem:[%s2 + $0x4] sm:$0xf]
      %v362 = vld [vmem:[%s2 + $0x8] sm:$0xf]
      %v363 = vld [vmem:[%s2 + $0xc] sm:$0xf]
      %v368 = vunpack.c.l.b16 %v360
      %v369 = vunpack.c.l.b16 %v361
      %v370 = vunpack.c.l.b16 %v362
      %v371 = vunpack.c.l.b16 %v363
      %v372 = vpack.c.b16 %v369, %v368
      %v373 = vpack.c.b16 %v371, %v370
      %vm376 = vcmask 261120
      %v378 = vsel %vm376, %v359, 0
      %380 = vmatprep.subr.bf16.mxu0 0
      %381 = vmatpush1.bf16.msra.mxu0 0
      %382 = vmatprep.subr.bf16.mxu0 0
      %383 = vmatpush1.bf16.msra.mxu0 0
      %384 = vmatprep.subr.bf16.mxu0 0
      %385 = vmatpush1.bf16.msra.mxu0 0
      %386 = vmatprep.subr.bf16.mxu0 0
      %387 = vmatpush1.bf16.msra.mxu0 0
      %388 = vmatprep.subr.bf16.mxu0 0
      %389 = vmatpush1.bf16.msra.mxu0 0
      %390 = vmatprep.subr.bf16.mxu0 0
      %391 = vmatpush1.bf16.msra.mxu0 0
      %392 = vmatprep.subr.bf16.mxu0 0
      %393 = vmatpush1.bf16.msra.mxu0 %v373
      %394 = vmatprep.subr.bf16.mxu0 0
      %395 = vmatpush1.bf16.msra.mxu0 %v372
      %396 = vmatprep.subr.bf16.mxu0 0
      %397 = vmatpush2.bf16.msra.mxu0 0
      %398 = vmatprep.subr.bf16.mxu0 0
      %399 = vmatpush2.bf16.msra.mxu0 0
      %400 = vmatprep.subr.bf16.mxu0 0
      %401 = vmatpush2.bf16.msra.mxu0 0
      %402 = vmatprep.subr.bf16.mxu0 0
      %403 = vmatpush2.bf16.msra.mxu0 0
      %404 = vmatprep.subr.bf16.mxu0 0
      %405 = vmatpush2.bf16.msra.mxu0 0
      %406 = vmatprep.subr.bf16.mxu0 0
      %407 = vmatpush2.bf16.msra.mxu0 0
      %408 = vmatprep.subr.bf16.mxu0 0
      %409 = vmatpush2.bf16.msra.mxu0 0
      %410 = vmatprep.subr.bf16.mxu0 0
      %411 = vmatpush2.bf16.msra.mxu0 0
      %412 = vmatprep.mubr.bf16.mxu0 0
      %413 = vmatmul.mubr.bf16.gmra.mxu0 %v378
      %v414 = vpop.f32.mrf.mxu0
      %v415 = vadd.f32 0.0, %v414
      %v416 = vpop.f32.mrf.mxu0
      %v417 = vpop.f32.mrf.mxu0
      %v418 = vpop.f32.mrf.mxu0
      %419 = vdwg.mxu0
      %v420 = vadd.f32 %v358, %v415
      %v421 = vxor.u32 %v420, 2147483648
      %v422 = vmul.f32 %v421, 1.442695
      %v423 = vpow.pop %v422
      %v424 = vadd.f32 %v423, 1.0
      %v425 = vrcp.pop %v424
      %v426 = vmul.f32 1.0, %v425
      %v427 = vtanh.pop %v420
      %v428 = vld [vmem:[#allocation5] sm:$0xff]
      %430 = vrot.lane.b32.xlu0 %v428, 32
      %v431 = vpop.permute.xlu0 %430
      %v433 = vmul.f32 %v426, %v431
      %435 = vrot.lane.b32.xlu0 %v427, 64
      %v436 = vpop.permute.xlu0 %435
      %v438 = vmul.f32 %v426, %v436
      %440 = vrot.lane.b32.xlu0 %v438, 32
      %v441 = vpop.permute.xlu0 %440
      %v443 = vadd.f32 %v433, %v441
      %v444 = vtanh.pop %v443
      %446 = vrot.lane.b32.xlu0 %v444, 64
      %v447 = vpop.permute.xlu0 %446
      %v449 = vmul.f32 %v426, %v447
      %451 = vrot.lane.b32.xlu0 %v443, 96
      %v452 = vpop.permute.xlu0 %451
      %454 = vst.msk [vmem:[#allocation5] sm:$0xff] %vm376, %v452
      %v455 = vpack.c.bf16 %v449, %v449
      %v457 = vunpack.c.l.b16 %v455
      %v458 = vpack.c.b16 %v457, %v457
      %459 = vrot.lane.b32.xlu0 %v458, 32
      %v460 = vpop.permute.xlu0 %459
      %vm462 = vcmask 257024
      %463 = vst.msk [vmem:[#allocation4] sm:$0xf] %vm462, %v460
      %464 = vst.msk [vmem:[#allocation3] sm:$0xf] %vm462, %v460
      %s465 = scalar_lea.vmem [#allocation2], 8
      %v466 = vld [vmem:[%s465] sm:$0xff]
      %v467 = vld [vmem:[#allocation4] sm:$0xf]
      %v468 = vld [vmem:[%s2] sm:$0xf]
      %v469 = vld [vmem:[%s2 + $0x4] sm:$0xf]
      %v470 = vld [vmem:[%s2 + $0x8] sm:$0xf]
      %v471 = vld [vmem:[%s2 + $0xc] sm:$0xf]
      %v476 = vunpack.c.l.b16 %v468
      %v477 = vunpack.c.l.b16 %v469
      %v478 = vunpack.c.l.b16 %v470
      %v479 = vunpack.c.l.b16 %v471
      %v480 = vpack.c.b16 %v477, %v476
      %v481 = vpack.c.b16 %v479, %v478
      %v485 = vsel %vm376, %v467, 0
      %487 = vmatprep.subr.bf16.mxu0 0
      %488 = vmatpush1.bf16.msra.mxu0 0
      %489 = vmatprep.subr.bf16.mxu0 0
      %490 = vmatpush1.bf16.msra.mxu0 0
      %491 = vmatprep.subr.bf16.mxu0 0
      %492 = vmatpush1.bf16.msra.mxu0 0
      %493 = vmatprep.subr.bf16.mxu0 0
      %494 = vmatpush1.bf16.msra.mxu0 0
      %495 = vmatprep.subr.bf16.mxu0 0
      %496 = vmatpush1.bf16.msra.mxu0 0
      %497 = vmatprep.subr.bf16.mxu0 0
      %498 = vmatpush1.bf16.msra.mxu0 0
      %499 = vmatprep.subr.bf16.mxu0 0
      %500 = vmatpush1.bf16.msra.mxu0 %v481
      %501 = vmatprep.subr.bf16.mxu0 0
      %502 = vmatpush1.bf16.msra.mxu0 %v480
      %503 = vmatprep.subr.bf16.mxu0 0
      %504 = vmatpush2.bf16.msra.mxu0 0
      %505 = vmatprep.subr.bf16.mxu0 0
      %506 = vmatpush2.bf16.msra.mxu0 0
      %507 = vmatprep.subr.bf16.mxu0 0
      %508 = vmatpush2.bf16.msra.mxu0 0
      %509 = vmatprep.subr.bf16.mxu0 0
      %510 = vmatpush2.bf16.msra.mxu0 0
      %511 = vmatprep.subr.bf16.mxu0 0
      %512 = vmatpush2.bf16.msra.mxu0 0
      %513 = vmatprep.subr.bf16.mxu0 0
      %514 = vmatpush2.bf16.msra.mxu0 0
      %515 = vmatprep.subr.bf16.mxu0 0
      %516 = vmatpush2.bf16.msra.mxu0 0
      %517 = vmatprep.subr.bf16.mxu0 0
      %518 = vmatpush2.bf16.msra.mxu0 0
      %519 = vmatprep.mubr.bf16.mxu0 0
      %520 = vmatmul.mubr.bf16.gmra.mxu0 %v485
      %v521 = vpop.f32.mrf.mxu0
      %v522 = vadd.f32 0.0, %v521
      %v523 = vpop.f32.mrf.mxu0
      %v524 = vpop.f32.mrf.mxu0
      %v525 = vpop.f32.mrf.mxu0
      %526 = vdwg.mxu0
      %v527 = vadd.f32 %v466, %v522
      %v528 = vxor.u32 %v527, 2147483648
      %v529 = vmul.f32 %v528, 1.442695
      %v530 = vpow.pop %v529
      %v531 = vadd.f32 %v530, 1.0
      %v532 = vrcp.pop %v531
      %v533 = vmul.f32 1.0, %v532
      %v534 = vtanh.pop %v527
      %v535 = vld [vmem:[#allocation5] sm:$0xff]
      %537 = vrot.lane.b32.xlu0 %v535, 32
      %v538 = vpop.permute.xlu0 %537
      %v540 = vmul.f32 %v533, %v538
      %542 = vrot.lane.b32.xlu0 %v534, 64
      %v543 = vpop.permute.xlu0 %542
      %v545 = vmul.f32 %v533, %v543
      %547 = vrot.lane.b32.xlu0 %v545, 32
      %v548 = vpop.permute.xlu0 %547
      %v550 = vadd.f32 %v540, %v548
      %v551 = vtanh.pop %v550
      %553 = vrot.lane.b32.xlu0 %v551, 64
      %v554 = vpop.permute.xlu0 %553
      %v556 = vmul.f32 %v533, %v554
      %558 = vrot.lane.b32.xlu0 %v550, 96
      %v559 = vpop.permute.xlu0 %558
      %561 = vst.msk [vmem:[#allocation5] sm:$0xff] %vm376, %v559
      %v562 = vpack.c.bf16 %v556, %v556
      %v564 = vunpack.c.l.b16 %v562
      %v565 = vpack.c.b16 %v564, %v564
      %566 = vrot.lane.b32.xlu0 %v565, 32
      %v567 = vpop.permute.xlu0 %566
      %569 = vst.msk [vmem:[#allocation4] sm:$0xf] %vm462, %v567
      %s570 = scalar_lea.vmem [#allocation3], 4
      %571 = vst.msk [vmem:[%s570] sm:$0xf] %vm462, %v567
      %s572 = scalar_lea.vmem [#allocation2], 16
      %v573 = vld [vmem:[%s572] sm:$0xff]
      %v574 = vld [vmem:[#allocation4] sm:$0xf]
      %v575 = vld [vmem:[%s2] sm:$0xf]
      %v576 = vld [vmem:[%s2 + $0x4] sm:$0xf]
      %v577 = vld [vmem:[%s2 + $0x8] sm:$0xf]
      %v578 = vld [vmem:[%s2 + $0xc] sm:$0xf]
      %v583 = vunpack.c.l.b16 %v575
      %v584 = vunpack.c.l.b16 %v576
      %v585 = vunpack.c.l.b16 %v577
      %v586 = vunpack.c.l.b16 %v578
      %v587 = vpack.c.b16 %v584, %v583
      %v588 = vpack.c.b16 %v586, %v585
      %v592 = vsel %vm376, %v574, 0
      %594 = vmatprep.subr.bf16.mxu0 0
      %595 = vmatpush1.bf16.msra.mxu0 0
      %596 = vmatprep.subr.bf16.mxu0 0
      %597 = vmatpush1.bf16.msra.mxu0 0
      %598 = vmatprep.subr.bf16.mxu0 0
      %599 = vmatpush1.bf16.msra.mxu0 0
      %600 = vmatprep.subr.bf16.mxu0 0
      %601 = vmatpush1.bf16.msra.mxu0 0
      %602 = vmatprep.subr.bf16.mxu0 0
      %603 = vmatpush1.bf16.msra.mxu0 0
      %604 = vmatprep.subr.bf16.mxu0 0
      %605 = vmatpush1.bf16.msra.mxu0 0
      %606 = vmatprep.subr.bf16.mxu0 0
      %607 = vmatpush1.bf16.msra.mxu0 %v588
      %608 = vmatprep.subr.bf16.mxu0 0
      %609 = vmatpush1.bf16.msra.mxu0 %v587
      %610 = vmatprep.subr.bf16.mxu0 0
      %611 = vmatpush2.bf16.msra.mxu0 0
      %612 = vmatprep.subr.bf16.mxu0 0
      %613 = vmatpush2.bf16.msra.mxu0 0
      %614 = vmatprep.subr.bf16.mxu0 0
      %615 = vmatpush2.bf16.msra.mxu0 0
      %616 = vmatprep.subr.bf16.mxu0 0
      %617 = vmatpush2.bf16.msra.mxu0 0
      %618 = vmatprep.subr.bf16.mxu0 0
      %619 = vmatpush2.bf16.msra.mxu0 0
      %620 = vmatprep.subr.bf16.mxu0 0
      %621 = vmatpush2.bf16.msra.mxu0 0
      %622 = vmatprep.subr.bf16.mxu0 0
      %623 = vmatpush2.bf16.msra.mxu0 0
      %624 = vmatprep.subr.bf16.mxu0 0
      %625 = vmatpush2.bf16.msra.mxu0 0
      %626 = vmatprep.mubr.bf16.mxu0 0
      %627 = vmatmul.mubr.bf16.gmra.mxu0 %v592
      %v628 = vpop.f32.mrf.mxu0
      %v629 = vadd.f32 0.0, %v628
      %v630 = vpop.f32.mrf.mxu0
      %v631 = vpop.f32.mrf.mxu0
      %v632 = vpop.f32.mrf.mxu0
      %633 = vdwg.mxu0
      %v634 = vadd.f32 %v573, %v629
      %v635 = vxor.u32 %v634, 2147483648
      %v636 = vmul.f32 %v635, 1.442695
      %v637 = vpow.pop %v636
      %v638 = vadd.f32 %v637, 1.0
      %v639 = vrcp.pop %v638
      %v640 = vmul.f32 1.0, %v639
      %v641 = vtanh.pop %v634
      %v642 = vld [vmem:[#allocation5] sm:$0xff]
      %644 = vrot.lane.b32.xlu0 %v642, 32
      %v645 = vpop.permute.xlu0 %644
      %v647 = vmul.f32 %v640, %v645
      %649 = vrot.lane.b32.xlu0 %v641, 64
      %v650 = vpop.permute.xlu0 %649
      %v652 = vmul.f32 %v640, %v650
      %654 = vrot.lane.b32.xlu0 %v652, 32
      %v655 = vpop.permute.xlu0 %654
      %v657 = vadd.f32 %v647, %v655
      %v658 = vtanh.pop %v657
      %660 = vrot.lane.b32.xlu0 %v658, 64
      %v661 = vpop.permute.xlu0 %660
      %v663 = vmul.f32 %v640, %v661
      %665 = vrot.lane.b32.xlu0 %v657, 96
      %v666 = vpop.permute.xlu0 %665
      %668 = vst.msk [vmem:[#allocation5] sm:$0xff] %vm376, %v666
      %v669 = vpack.c.bf16 %v663, %v663
      %v671 = vunpack.c.l.b16 %v669
      %v672 = vpack.c.b16 %v671, %v671
      %673 = vrot.lane.b32.xlu0 %v672, 32
      %v674 = vpop.permute.xlu0 %673
      %676 = vst.msk [vmem:[#allocation4] sm:$0xf] %vm462, %v674
      %s677 = scalar_lea.vmem [#allocation3], 8
      %678 = vst.msk [vmem:[%s677] sm:$0xf] %vm462, %v674
      %s679 = scalar_lea.vmem [#allocation2], 24
      %v680 = vld [vmem:[%s679] sm:$0xff]
      %v681 = vld [vmem:[#allocation4] sm:$0xf]
      %v682 = vld [vmem:[%s2] sm:$0xf]
      %v683 = vld [vmem:[%s2 + $0x4] sm:$0xf]
      %v684 = vld [vmem:[%s2 + $0x8] sm:$0xf]
      %v685 = vld [vmem:[%s2 + $0xc] sm:$0xf]
      %v690 = vunpack.c.l.b16 %v682
      %v691 = vunpack.c.l.b16 %v683
      %v692 = vunpack.c.l.b16 %v684
      %v693 = vunpack.c.l.b16 %v685
      %v694 = vpack.c.b16 %v691, %v690
      %v695 = vpack.c.b16 %v693, %v692
      %v699 = vsel %vm376, %v681, 0
      %701 = vmatprep.subr.bf16.mxu0 0
      %702 = vmatpush1.bf16.msra.mxu0 0
      %703 = vmatprep.subr.bf16.mxu0 0
      %704 = vmatpush1.bf16.msra.mxu0 0
      %705 = vmatprep.subr.bf16.mxu0 0
      %706 = vmatpush1.bf16.msra.mxu0 0
      %707 = vmatprep.subr.bf16.mxu0 0
      %708 = vmatpush1.bf16.msra.mxu0 0
      %709 = vmatprep.subr.bf16.mxu0 0
      %710 = vmatpush1.bf16.msra.mxu0 0
      %711 = vmatprep.subr.bf16.mxu0 0
      %712 = vmatpush1.bf16.msra.mxu0 0
      %713 = vmatprep.subr.bf16.mxu0 0
      %714 = vmatpush1.bf16.msra.mxu0 %v695
      %715 = vmatprep.subr.bf16.mxu0 0
      %716 = vmatpush1.bf16.msra.mxu0 %v694
      %717 = vmatprep.subr.bf16.mxu0 0
      %718 = vmatpush2.bf16.msra.mxu0 0
      %719 = vmatprep.subr.bf16.mxu0 0
      %720 = vmatpush2.bf16.msra.mxu0 0
      %721 = vmatprep.subr.bf16.mxu0 0
      %722 = vmatpush2.bf16.msra.mxu0 0
      %723 = vmatprep.subr.bf16.mxu0 0
      %724 = vmatpush2.bf16.msra.mxu0 0
      %725 = vmatprep.subr.bf16.mxu0 0
      %726 = vmatpush2.bf16.msra.mxu0 0
      %727 = vmatprep.subr.bf16.mxu0 0
      %728 = vmatpush2.bf16.msra.mxu0 0
      %729 = vmatprep.subr.bf16.mxu0 0
      %730 = vmatpush2.bf16.msra.mxu0 0
      %731 = vmatprep.subr.bf16.mxu0 0
      %732 = vmatpush2.bf16.msra.mxu0 0
      %733 = vmatprep.mubr.bf16.mxu0 0
      %734 = vmatmul.mubr.bf16.gmra.mxu0 %v699
      %v735 = vpop.f32.mrf.mxu0
      %v736 = vadd.f32 0.0, %v735
      %v737 = vpop.f32.mrf.mxu0
      %v738 = vpop.f32.mrf.mxu0
      %v739 = vpop.f32.mrf.mxu0
      %740 = vdwg.mxu0
      %v741 = vadd.f32 %v680, %v736
      %v742 = vxor.u32 %v741, 2147483648
      %v743 = vmul.f32 %v742, 1.442695
      %v744 = vpow.pop %v743
      %v745 = vadd.f32 %v744, 1.0
      %v746 = vrcp.pop %v745
      %v747 = vmul.f32 1.0, %v746
      %v748 = vtanh.pop %v741
      %v749 = vld [vmem:[#allocation5] sm:$0xff]
      %751 = vrot.lane.b32.xlu0 %v749, 32
      %v752 = vpop.permute.xlu0 %751
      %v754 = vmul.f32 %v747, %v752
      %756 = vrot.lane.b32.xlu0 %v748, 64
      %v757 = vpop.permute.xlu0 %756
      %v759 = vmul.f32 %v747, %v757
      %761 = vrot.lane.b32.xlu0 %v759, 32
      %v762 = vpop.permute.xlu0 %761
      %v764 = vadd.f32 %v754, %v762
      %v765 = vtanh.pop %v764
      %767 = vrot.lane.b32.xlu0 %v765, 64
      %v768 = vpop.permute.xlu0 %767
      %v770 = vmul.f32 %v747, %v768
      %772 = vrot.lane.b32.xlu0 %v764, 96
      %v773 = vpop.permute.xlu0 %772
      %775 = vst.msk [vmem:[#allocation5] sm:$0xff] %vm376, %v773
      %v776 = vpack.c.bf16 %v770, %v770
      %v778 = vunpack.c.l.b16 %v776
      %v779 = vpack.c.b16 %v778, %v778
      %780 = vrot.lane.b32.xlu0 %v779, 32
      %v781 = vpop.permute.xlu0 %780
      %783 = vst.msk [vmem:[#allocation4] sm:$0xf] %vm462, %v781
      %s784 = scalar_lea.vmem [#allocation3], 12
      %785 = vst.msk [vmem:[%s784] sm:$0xf] %vm462, %v781
      %v786 = vld [vmem:[#allocation3] sm:$0xf]
      %v787 = vld [vmem:[#allocation3 + $0x4] sm:$0xf]
      %v788 = vld [vmem:[#allocation3 + $0x8] sm:$0xf]
      %v789 = vld [vmem:[#allocation3 + $0xc] sm:$0xf]
      %v790 = vld [vmem:[%s3] sm:$0xf]
      %v791 = vld [vmem:[%s3 + $0x4] sm:$0xf]
      %v792 = vld [vmem:[%s3 + $0x8] sm:$0xf]
      %v793 = vld [vmem:[%s3 + $0xc] sm:$0xf]
      %v794 = vld [vmem:[%s4] sm:$0x1]
      %v796 = vlaneseq
      %v797 = vshrl.u32 %v796, 7
      %v798 = vsub.s32 0, %v797
      %v799 = vrot.slane %v794, %v798
      %v805 = vunpack.c.l.b16 %v786
      %v806 = vunpack.c.l.b16 %v787
      %v807 = vunpack.c.l.b16 %v788
      %v808 = vunpack.c.l.b16 %v789
      %v809 = vpack.c.b16 %v806, %v805
      %v810 = vpack.c.b16 %v808, %v807
      %v815 = vunpack.c.l.b16 %v790
      %v816 = vunpack.c.l.b16 %v791
      %v817 = vunpack.c.l.b16 %v792
      %v818 = vunpack.c.l.b16 %v793
      %v819 = vpack.c.b16 %v816, %v815
      %v820 = vpack.c.b16 %v818, %v817
      %v824 = vsel %vm376, %v809, 0
      %v827 = vsel %vm376, %v810, 0
      %829 = vmatprep.subr.bf16.mxu0 0
      %830 = vmatpush1.bf16.msra.mxu0 0
      %831 = vmatprep.subr.bf16.mxu0 0
      %832 = vmatpush1.bf16.msra.mxu0 0
      %833 = vmatprep.subr.bf16.mxu0 0
      %834 = vmatpush1.bf16.msra.mxu0 0
      %835 = vmatprep.subr.bf16.mxu0 0
      %836 = vmatpush1.bf16.msra.mxu0 0
      %837 = vmatprep.subr.bf16.mxu0 0
      %838 = vmatpush1.bf16.msra.mxu0 0
      %839 = vmatprep.subr.bf16.mxu0 0
      %840 = vmatpush1.bf16.msra.mxu0 0
      %841 = vmatprep.subr.bf16.mxu0 0
      %842 = vmatpush1.bf16.msra.mxu0 %v820
      %843 = vmatprep.subr.bf16.mxu0 0
      %844 = vmatpush1.bf16.msra.mxu0 %v819
      %845 = vmatprep.subr.bf16.mxu0 0
      %846 = vmatpush2.bf16.msra.mxu0 0
      %847 = vmatprep.subr.bf16.mxu0 0
      %848 = vmatpush2.bf16.msra.mxu0 0
      %849 = vmatprep.subr.bf16.mxu0 0
      %850 = vmatpush2.bf16.msra.mxu0 0
      %851 = vmatprep.subr.bf16.mxu0 0
      %852 = vmatpush2.bf16.msra.mxu0 0
      %853 = vmatprep.subr.bf16.mxu0 0
      %854 = vmatpush2.bf16.msra.mxu0 0
      %855 = vmatprep.subr.bf16.mxu0 0
      %856 = vmatpush2.bf16.msra.mxu0 0
      %857 = vmatprep.subr.bf16.mxu0 0
      %858 = vmatpush2.bf16.msra.mxu0 0
      %859 = vmatprep.subr.bf16.mxu0 0
      %860 = vmatpush2.bf16.msra.mxu0 0
      %861 = vmatprep.mubr.bf16.mxu0 0
      %862 = vmatmul.mubr.bf16.gmra.mxu0 %v824
      %v863 = vpop.f32.mrf.mxu0
      %v864 = vadd.f32 %v799, %v863
      %v865 = vpop.f32.mrf.mxu0
      %v866 = vpop.f32.mrf.mxu0
      %v867 = vadd.f32 %v799, %v866
      %v868 = vpop.f32.mrf.mxu0
      %869 = vmatprep.mubr.bf16.mxu0 0
      %870 = vmatmul.mubr.bf16.gmra.mxu0 %v827
      %v871 = vpop.f32.mrf.mxu0
      %v872 = vadd.f32 %v799, %v871
      %v873 = vpop.f32.mrf.mxu0
      %v874 = vpop.f32.mrf.mxu0
      %v875 = vadd.f32 %v799, %v874
      %v876 = vpop.f32.mrf.mxu0
      %877 = vdwg.mxu0
      %vm878 = vcmask 64512
      %v879 = vsel %vm878, %v864, -inf
      %880 = vmax.xlane.f32.xlu0 %v879
      %v881 = vpop.xlane.xlu0 %880
      %v882 = vsel %vm878, %v867, -inf
      %883 = vmax.xlane.f32.xlu0 %v882
      %v884 = vpop.xlane.xlu0 %883
      %v885 = vsel %vm878, %v872, -inf
      %886 = vmax.xlane.f32.xlu0 %v885
      %v887 = vpop.xlane.xlu0 %886
      %v888 = vsel %vm878, %v875, -inf
      %889 = vmax.xlane.f32.xlu0 %v888
      %v890 = vpop.xlane.xlu0 %889
      %v891 = vsub.f32 %v864, %v881
      %v892 = vsub.f32 %v867, %v884
      %v893 = vsub.f32 %v872, %v887
      %v894 = vsub.f32 %v875, %v890
      %v895 = vmul.f32 %v891, 1.442695
      %v896 = vpow.pop %v895
      %v897 = vmul.f32 %v892, 1.442695
      %v898 = vpow.pop %v897
      %v899 = vmul.f32 %v893, 1.442695
      %v900 = vpow.pop %v899
      %v901 = vmul.f32 %v894, 1.442695
      %v902 = vpow.pop %v901
      %v903 = vsel %vm878, %v896, 0.0
      %904 = vadd.xlane.f32.xlu0 %v903
      %v905 = vpop.xlane.xlu0 %904
      %v906 = vsel %vm878, %v898, 0.0
      %907 = vadd.xlane.f32.xlu0 %v906
      %v908 = vpop.xlane.xlu0 %907
      %v909 = vsel %vm878, %v900, 0.0
      %910 = vadd.xlane.f32.xlu0 %v909
      %v911 = vpop.xlane.xlu0 %910
      %v912 = vsel %vm878, %v902, 0.0
      %913 = vadd.xlane.f32.xlu0 %v912
      %v914 = vpop.xlane.xlu0 %913
      %v915 = vrcp.pop %v905
      %v916 = vmul.f32 %v896, %v915
      %v917 = vrcp.pop %v908
      %v918 = vmul.f32 %v898, %v917
      %v919 = vrcp.pop %v911
      %v920 = vmul.f32 %v900, %v919
      %v921 = vrcp.pop %v914
      %v922 = vmul.f32 %v902, %v921
      %923 = vst.msk [vmem:[%s260] sm:$0xff] %vm878, %v916
      %924 = vst.msk [vmem:[%s260 + $0x8] sm:$0xff] %vm878, %v918
      %925 = vst.msk [vmem:[%s260 + $0x10] sm:$0xff] %vm878, %v920
      %926 = vst.msk [vmem:[%s260 + $0x18] sm:$0xff] %vm878, %v922
      %p927 = scmp.lt.s32.totalorder %s20, 0
      %s928 = scalar_select %p927, %s20, 0
      %p929 = scmp.lt.s32.totalorder %s21, 1
      %s930 = scalar_select %p929, %s21, 1
      %s931 = smul.addr %s930, 4
      %s932 = smul.addr %s928, 8
      %s933 = sadd.s32 %s931, %s932
      %s934 = smul.addr %s933, 8
      %s935 = scalar_lea.vmem %s5, %s934
      // Predicated region
      $region45: #{tpu_custom_call.1} parent=39 // pred_check
        %p936 = pneg %p160
      $region46: #{tpu_custom_call.1} parent=39 // pred_check_branch
        %938 = sbr.rel (%p936) target = $region48
      $region47: #{tpu_custom_call.1} parent=39 // pred_region
        _
      $region48: #{tpu_custom_call.1} parent=39 // pred_fallthru
        _
    $region40: #{tpu_custom_call.1} parent=5 // pred_fallthru
      _
    %p939 = scmp.le.s32.totalorder 2, %s11
    // Predicated region
    $region49: #{tpu_custom_call.1} parent=5 // pred_check
      %p940 = pneg %p939
    $region50: #{tpu_custom_call.1} parent=5 // pred_check_branch
      %942 = sbr.rel (%p940) target = $region52
    $region51: #{tpu_custom_call.1} parent=5 // pred_region
      %s943 = ssub.s32 %s11, 2
      // Predicated region
      $region53: #{tpu_custom_call.1} parent=51 // pred_check
        %p944 = pneg %p166
      $region54: #{tpu_custom_call.1} parent=51 // pred_check_branch
        %946 = sbr.rel (%p944) target = $region56
      $region55: #{tpu_custom_call.1} parent=51 // pred_region
        %p947 = scmp.lt.s32.totalorder %s22, 0
        %s948 = scalar_select %p947, %s22, 0
        %p949 = scmp.lt.s32.totalorder %s23, 1
        %s950 = scalar_select %p949, %s23, 1
        %s951 = smul.addr %s950, 4
        %s952 = smul.addr %s948, 8
        %s953 = sadd.s32 %s951, %s952
        %s954 = smul.addr %s953, 8
        %s955 = scalar_lea.vmem %s5, %s954
      $region56: #{tpu_custom_call.1} parent=51 // pred_fallthru
        _
    $region52: #{tpu_custom_call.1} parent=5 // pred_fallthru
      _
  $region6: #{tpu_custom_call.1} parent=0 // loop_footer
    %s15 = sadd.s32 1, %s11
  $region7: #{tpu_custom_call.1} parent=0 // loop_footer_branch
    %10 = sbr.rel target = $region3
  $region8: #{tpu_custom_call.1} parent=0 // loop_exit
    _

</llo_original>
